<compile_context>
chip_gen: v7x
topology: tpu7x:2x2x1
jax: 0.10.0
libtpu: 0.0.40
codegen_flags: <defaults>
</compile_context>

<pallas_src>
import functools

import jax
import jax.numpy as jnp
from jax import lax
from jax.experimental import pallas as pl
from jax.experimental.pallas import tpu as pltpu

_MIB = 1024 * 1024


def _round_up(x, m):
    return (x + m - 1) // m * m


def _vmem_capacity_bytes():
    """Physical VMEM of the local TPU generation; conservative fallback if unknown."""
    try:
        return int(pltpu.get_tpu_info().vmem_capacity_bytes)
    except Exception:
        return 64 * _MIB          # v7x-sized fallback is safe on every generation


# ---------------------------------------------------------------------------
# Kernel bodies
# ---------------------------------------------------------------------------

def _softmax_transposed(s, approx):
    """Column softmax (axis=0) of the symmetric Gram matrix == A^T, A = row_softmax(S)."""
    s_max = jnp.max(s, axis=0, keepdims=True)
    e = jnp.exp(s - s_max)
    inv = pl.reciprocal(jnp.sum(e, axis=0, keepdims=True), approx=approx)
    return e * inv


def _residual_store(o_ref, beta, y, xf):
    """out = beta*y + xf without materializing an extra full f32 copy of xf."""
    if o_ref.dtype == jnp.float32:
        o_ref[...] = beta * y + xf
    else:
        # bf16 path: add in the output dtype, avoids a (C, N) f32 upcast temporary.
        o_ref[...] = (beta * y).astype(o_ref.dtype) + xf


def _ca_resident_kernel(beta_ref, x_ref, o_ref, *, mm_dtype, approx):
    """Single pass: whole (C, N) slab of one batch element resident in VMEM."""
    xf = x_ref[...]                                                    # (C, N)
    xm = xf.astype(mm_dtype)
    # Gram over channels: contract the last (lane) dim of both operands (no xf.T copy).
    s = lax.dot_general(xm, xm, (((1,), (1,)), ((), ())),
                        preferred_element_type=jnp.float32)            # (C, C) f32
    a_t = _softmax_transposed(s, approx)                               # == A^T, f32
    # Y = A^T @ xf as a canonical (M,K)@(K,N) MXU contraction (no transposes).
    y = lax.dot_general(a_t.astype(mm_dtype), xm, (((1,), (0,)), ((), ())),
                        preferred_element_type=jnp.float32)            # (C, N) f32
    _residual_store(o_ref, beta_ref[0, 0], y, xf)


def _ca_gram_softmax_kernel(x_ref, at_ref, s_acc, *, mm_dtype, approx):
    """Pass 1 (tiled): accumulate the (C, C) Gram matrix over N tiles; emit A^T at the end."""
    nt = pl.program_id(1)

    @pl.when(nt == 0)
    def _init():
        s_acc[...] = jnp.zeros_like(s_acc)

    xm = x_ref[...].astype(mm_dtype)                                   # (C, tn)
    s_acc[...] += lax.dot_general(xm, xm, (((1,), (1,)), ((), ())),
                                  preferred_element_type=jnp.float32)

    # NOTE: at_ref's block index is constant across the (last, "arbitrary") nt axis, so the
    # output block stays VMEM-resident over the whole reduction and is written back to HBM
    # exactly once, here.  Keep nt as the last grid axis if this kernel is reorganized.
    @pl.when(nt == pl.num_programs(1) - 1)
    def _finalize():
        at_ref[...] = _softmax_transposed(s_acc[...], approx).astype(at_ref.dtype)


def _ca_apply_kernel(beta_ref, at_ref, x_ref, o_ref, *, mm_dtype):
    """Pass 2 (tiled): out_tile = beta * (A^T @ xf_tile) + xf_tile."""
    xf = x_ref[...]                                                    # (C, tn)
    a_t = at_ref[...].astype(mm_dtype)                                 # (C, C), already A^T
    y = lax.dot_general(a_t, xf.astype(mm_dtype), (((1,), (0,)), ((), ())),
                        preferred_element_type=jnp.float32)            # (C, tn) f32
    _residual_store(o_ref, beta_ref[0, 0], y, xf)


# ---------------------------------------------------------------------------
# Tile / budget selection
# ---------------------------------------------------------------------------

def _pick_tile_n(n, c, isz, tiled_limit, big_vmem):
    """Pick a lane-dense N tile; prefer one that divides N exactly (no pad/slice passes)."""
    if big_vmem:                      # v5e / v6e (128 MiB VMEM)
        target = 2048
    else:                             # v7x (64 MiB VMEM)
        target = 512 if c >= 768 else 1024
    # Pass-2 VMEM model: 3 input bufs + 2 output bufs (+ f32 temps) per lane column,
    # plus A^T (single-buffered) and headroom for Mosaic internal scratch.
    fixed = 2 * c * c * 4 + 4 * _MIB
    per_col = max(1, c * (6 * isz + 8))
    cap = (tiled_limit - fixed) // per_col
    cap = max(128, (cap // 128) * 128)
    tn = max(128, min(target, cap))
    tn = min(tn, _round_up(n, 128))
    if n % 128 == 0:
        m = n // 128
        k = tn // 128
        while k > 1 and m % k:
            k -= 1
        d = 128 * k
        if d >= min(512, n):          # good divisor found -> no padding round-trips
            return d, False
    return tn, (n % tn) != 0


# ---------------------------------------------------------------------------
# Wrapper
# ---------------------------------------------------------------------------

def channel_attention(x, beta, *, tile_n=None, matmul_dtype=None,
                      approx_softmax=None, force_tiled=False):
    """x: (b, c, h, w); beta: scalar parameter. Matches ChannelAttention.forward.

    tile_n:        override the auto-picked N tile of the tiled path (testing / tuning).
    matmul_dtype:  operand dtype for the two matmuls (e.g. jnp.bfloat16); accumulation is
                   always f32.  Default: the input dtype (exact for f32 inputs).
    approx_softmax: use the EUP approximate reciprocal in the softmax.  Default: only for
                   sub-f32 inputs (where the loss is far below the output precision).
    """
    b, c, h, w = x.shape
    n = h * w
    xf = x.reshape(b, c, n)
    x_dtype = xf.dtype
    isz = jnp.dtype(x_dtype).itemsize
    mm_dtype = jnp.dtype(matmul_dtype) if matmul_dtype is not None else jnp.dtype(x_dtype)
    approx = bool(approx_softmax) if approx_softmax is not None else (x_dtype != jnp.float32)
    beta_arr = jnp.asarray(beta, dtype=jnp.float32).reshape(1, 1)

    # ---- per-generation VMEM budgets ---------------------------------------------------
    vmem_cap = _vmem_capacity_bytes()
    big_vmem = vmem_cap >= 96 * _MIB                       # v5e/v6e: 128 MiB, v7x: 64 MiB
    resident_limit = (3 * vmem_cap) // 4 if big_vmem else vmem_cap // 2   # 96 MiB / 32 MiB
    resident_budget = resident_limit - 8 * _MIB            # headroom for Mosaic scratch
    tiled_limit = 64 * _MIB if big_vmem else 40 * _MIB

    # in + out double-buffered (C, N) blocks + f32 body temporaries + small CxC temps.
    resident_bytes = 4 * c * n * isz + 2 * c * n * 4 + 6 * c * c * 4

    if (not force_tiled) and resident_bytes <= resident_budget:
        # --- resident fast path: one pass, one HBM read per batch element ---------------
        out_flat = pl.pallas_call(
            functools.partial(_ca_resident_kernel, mm_dtype=mm_dtype, approx=approx),
            out_shape=jax.ShapeDtypeStruct((b, c, n), x_dtype),
            grid=(b,),
            in_specs=[
                pl.BlockSpec(memory_space=pltpu.MemorySpace.SMEM),        # beta scalar
                pl.BlockSpec((pl.Squeezed(), c, n), lambda i: (i, 0, 0)),
            ],
            out_specs=pl.BlockSpec((pl.Squeezed(), c, n), lambda i: (i, 0, 0)),
            compiler_params=pltpu.CompilerParams(
                dimension_semantics=("parallel",),
                vmem_limit_bytes=resident_limit),
        )(beta_arr, xf)
        return out_flat.reshape(b, c, h, w)

    # --- tiled two-pass path (large UNet3+ feature maps) --------------------------------
    if tile_n is not None:
        tn = max(128, _round_up(int(tile_n), 128))
        tn = min(tn, _round_up(n, 128))
        needs_pad = (n % tn) != 0
    else:
        tn, needs_pad = _pick_tile_n(n, c, isz, tiled_limit, big_vmem)

    if needs_pad:
        # Zero columns add nothing to the Gram matrix and produce zero output columns,
        # so padding is exact (sliced off below).  Only hit when h*w is not 128-friendly.
        n_pad = _round_up(n, tn)
        xf_p = jnp.pad(xf, ((0, 0), (0, 0), (0, n_pad - n)))
    else:
        n_pad = n
        xf_p = xf
    n_tiles = n_pad // tn
    x_bufs = 3 if n_tiles >= 3 else 2

    # Possible further v7x win (not implemented): for b == 1, split pass 1's N reduction
    # across the two TensorCores (leading size-2 parallel axis + tiny CxC combine).

    def run_pass1(buffered):
        x_kw = {"pipeline_mode": pl.Buffered(x_bufs)} if buffered else {}
        return pl.pallas_call(
            functools.partial(_ca_gram_softmax_kernel, mm_dtype=mm_dtype, approx=approx),
            out_shape=jax.ShapeDtypeStruct((b, c, c), jnp.float32),      # stores A^T
            grid=(b, n_tiles),
            in_specs=[pl.BlockSpec((pl.Squeezed(), c, tn), lambda i, k: (i, 0, k), **x_kw)],
            out_specs=pl.BlockSpec((pl.Squeezed(), c, c), lambda i, k: (i, 0, 0)),
            scratch_shapes=[pltpu.VMEM((c, c), jnp.float32)],
            compiler_params=pltpu.CompilerParams(
                dimension_semantics=("parallel", "arbitrary"),
                vmem_limit_bytes=tiled_limit),
        )(xf_p)

    def run_pass2(attn_t, buffered):
        a_kw = {"pipeline_mode": pl.Buffered(1)} if buffered else {}     # A^T is N-invariant
        x_kw = {"pipeline_mode": pl.Buffered(x_bufs)} if buffered else {}
        return pl.pallas_call(
            functools.partial(_ca_apply_kernel, mm_dtype=mm_dtype),
            out_shape=jax.ShapeDtypeStruct((b, c, n_pad), x_dtype),
            grid=(b, n_tiles),
            in_specs=[
                pl.BlockSpec(memory_space=pltpu.MemorySpace.SMEM),        # beta scalar
                pl.BlockSpec((pl.Squeezed(), c, c), lambda i, k: (i, 0, 0), **a_kw),
                pl.BlockSpec((pl.Squeezed(), c, tn), lambda i, k: (i, 0, k), **x_kw),
            ],
            out_specs=pl.BlockSpec((pl.Squeezed(), c, tn), lambda i, k: (i, 0, k)),
            compiler_params=pltpu.CompilerParams(
                dimension_semantics=("parallel", "parallel"),
                vmem_limit_bytes=tiled_limit),
        )(beta_arr, attn_t, xf_p)

    # Pass 1: per-batch A^T = column-softmax(xf @ xf^T).  Fall back to default buffering
    # if this jax build rejects the pipeline_mode / buffer-count hints.
    try:
        attn_t = run_pass1(True)
    except Exception:
        attn_t = run_pass1(False)

    # Pass 2: out = beta * (A^T @ xf) + xf, fully parallel over (batch, N tiles).
    try:
        out_p = run_pass2(attn_t, True)
    except Exception:
        out_p = run_pass2(attn_t, False)

    if needs_pad:
        out_p = out_p[:, :, :n]
    return out_p.reshape(b, c, h, w)


def channel_attention_ref(x, beta):
    """Pure-JAX reference replicating the PyTorch forward exactly."""
    b, c, h, w = x.shape
    xf = x.reshape(b, c, h * w)
    s = jnp.einsum("bcn,bdn->bcd", xf, xf)
    a = jax.nn.softmax(s, axis=2)
    y = jnp.einsum("bdc,bdn->bcn", a, xf)   # A.transpose(1,2) @ xf
    return (beta * y + xf).reshape(b, c, h, w)


if __name__ == "__main__":
    key = jax.random.PRNGKey(0)
    b, c, h, w = 2, 4, 16, 16
    x = jax.random.normal(key, (b, c, h, w), dtype=jnp.float32)

    # Parameter initialized exactly as in the module: beta.data.fill_(0.0)
    beta_init = jnp.float32(0.0)
    out = channel_attention(x, beta_init)                    # resident fast path
    jax.block_until_ready(out)
    ref = channel_attention_ref(x, beta_init)
    assert jnp.allclose(out, ref, atol=1e-5, rtol=1e-5)

    # Non-trivial path (nonzero beta): resident and explicitly-tiled code paths.
    beta_test = jnp.float32(0.5)
    ref2 = channel_attention_ref(x, beta_test)
    out2 = channel_attention(x, beta_test)                                   # resident
    out2_t = channel_attention(x, beta_test, tile_n=128, force_tiled=True)   # tiled, 2 N tiles
    out2_a = channel_attention(x, beta_test, force_tiled=True)               # tiled, auto tn (no pad)
    jax.block_until_ready((out2, out2_t, out2_a))
    assert jnp.allclose(out2, ref2, atol=1e-4, rtol=1e-4)
    assert jnp.allclose(out2_t, ref2, atol=1e-4, rtol=1e-4)
    assert jnp.allclose(out2_a, ref2, atol=1e-4, rtol=1e-4)

    # Spatial size not a multiple of 128 -> exercises the ragged-N zero-padding fallback.
    x3 = jax.random.normal(jax.random.PRNGKey(1), (2, 8, 20, 20), dtype=jnp.float32)
    out3 = channel_attention(x3, beta_test, tile_n=128, force_tiled=True)
    jax.block_until_ready(out3)
    ref3 = channel_attention_ref(x3, beta_test)
    assert jnp.allclose(out3, ref3, atol=1e-4, rtol=1e-4)

    print("KERNEL_OK")
</pallas_src>

<mosaic_0001>
module attributes {stable_mosaic.version = 11 : i64} {
  func.func @_ca_resident_kernel(%arg0: i32, %arg1: memref<1x1xf32, #tpu.memory_space<smem>>, %arg2: memref<1x4x256xf32, #tpu.memory_space<vmem>>, %arg3: memref<1x4x256xf32, #tpu.memory_space<vmem>>) attributes {dimension_semantics = [#tpu.dimension_semantics<parallel>], iteration_bounds = array<i64: 2>, scalar_prefetch = 0 : i64, scratch_operands = 0 : i64, tpu.core_type = #tpu.core_type<tc>, window_params = [{transform_indices = @transform_0, window_bounds = array<i64: 1, 1>}, {transform_indices = @transform_1, window_bounds = array<i64: 1, 4, 256>}, {transform_indices = @transform_2, window_bounds = array<i64: 1, 4, 256>}]} {
    %c0 = arith.constant 0 : index
    %c0_0 = arith.constant 0 : index
    %c0_1 = arith.constant 0 : index
    %0 = vector.load %arg2[%c0, %c0_0, %c0_1] : memref<1x4x256xf32, #tpu.memory_space<vmem>>, vector<1x4x256xf32>
    %1 = vector.shape_cast %0 : vector<1x4x256xf32> to vector<4x256xf32>
    %cst = arith.constant dense<0.000000e+00> : vector<4x4xf32>
    %2 = tpu.matmul %1, %1, %cst {dimension_numbers = #tpu.dot_dimension_numbers<[1], [1], [0], [0], [0, 0, 1, 0], [], []>} : vector<4x256xf32>, vector<4x256xf32>, vector<4x4xf32> -> vector<4x4xf32>
    %cst_2 = arith.constant dense<0xFF800000> : vector<4xf32>
    %3 = vector.multi_reduction <maximumf>, %2, %cst_2 [0] : vector<4x4xf32> to vector<4xf32>
    %4 = vector.shape_cast %3 : vector<4xf32> to vector<1x4xf32>
    %5 = vector.broadcast %4 : vector<1x4xf32> to vector<4x4xf32>
    %6 = arith.subf %2, %5 : vector<4x4xf32>
    %7 = math.exp %6 : vector<4x4xf32>
    %cst_3 = arith.constant dense<0.000000e+00> : vector<4xf32>
    %8 = vector.multi_reduction <add>, %7, %cst_3 [0] : vector<4x4xf32> to vector<4xf32>
    %9 = vector.shape_cast %8 : vector<4xf32> to vector<1x4xf32>
    %10 = tpu.reciprocal %9 : vector<1x4xf32> -> vector<1x4xf32>
    %11 = vector.broadcast %10 : vector<1x4xf32> to vector<4x4xf32>
    %12 = arith.mulf %7, %11 : vector<4x4xf32>
    %cst_4 = arith.constant dense<0.000000e+00> : vector<4x256xf32>
    %13 = tpu.matmul %12, %1, %cst_4 {dimension_numbers = #tpu.dot_dimension_numbers<[1], [0], [0], [1], [0, 0, 1, 1], [], []>} : vector<4x4xf32>, vector<4x256xf32>, vector<4x256xf32> -> vector<4x256xf32>
    %c0_5 = arith.constant 0 : index
    %c0_6 = arith.constant 0 : index
    %14 = memref.load %arg1[%c0_5, %c0_6] : memref<1x1xf32, #tpu.memory_space<smem>>
    %15 = vector.broadcast %14 : f32 to vector<4x256xf32>
    %16 = arith.mulf %15, %13 : vector<4x256xf32>
    %17 = arith.addf %16, %1 : vector<4x256xf32>
    %c0_7 = arith.constant 0 : index
    %c0_8 = arith.constant 0 : index
    %c0_9 = arith.constant 0 : index
    %18 = vector.load %arg3[%c0_7, %c0_8, %c0_9] : memref<1x4x256xf32, #tpu.memory_space<vmem>>, vector<1x4x256xf32>
    %19 = vector.shape_cast %18 : vector<1x4x256xf32> to vector<4x256xf32>
    %20 = vector.shape_cast %17 : vector<4x256xf32> to vector<1x4x256xf32>
    tpu.vector_store %arg3[%c0_7, %c0_8, %c0_9], %20 {strides = array<i32>} : memref<1x4x256xf32, #tpu.memory_space<vmem>>, vector<1x4x256xf32>,
    return
  }
  func.func @transform_0(%arg0: i32) -> (i32, i32) {
    %c0_i32 = arith.constant 0 : i32
    %c0_i32_0 = arith.constant 0 : i32
    %c0_i32_1 = arith.constant 0 : i32
    return %c0_i32, %c0_i32_0 : i32, i32
  }
  func.func @transform_1(%arg0: i32) -> (i32, i32, i32) {
    %c0_i32 = arith.constant 0 : i32
    %c0_i32_0 = arith.constant 0 : i32
    %c0_i32_1 = arith.constant 0 : i32
    return %arg0, %c0_i32, %c0_i32_0 : i32, i32, i32
  }
  func.func @transform_2(%arg0: i32) -> (i32, i32, i32) {
    %c0_i32 = arith.constant 0 : i32
    %c0_i32_0 = arith.constant 0 : i32
    %c0_i32_1 = arith.constant 0 : i32
    return %arg0, %c0_i32, %c0_i32_0 : i32, i32, i32
  }
}

</mosaic_0001>

<llo_original>
// kernel: tpu_custom_call.1
$region0: #{tpu_custom_call.1}
  #allocation0 [shape = 'u32[]', space=smem, size = 0x4, offset = 0x4, fixed_abs, tag = 'smem constant byte address 0x4 - core index']
  #allocation1 [shape = 'u32[144,128]{1,0:T(1,128)}', space=vmem, size = 0x12000, scoped, tag = 'internal scratch']
  #allocation2 [shape = 'f32[1,1]{1,0:T(1,128)S(6)}', space=smem, size = 0x200, scoped, tag = 'scoped memory for tpu_custom_call.1']
  %s0 = inlined_call_operand.<no memory space> [shape: f32[1,1], index: 0, kind: input, shape index: {}]
  %s1 = inlined_call_operand.hbm [shape: f32[2,4,256], index: 1, kind: input, shape index: {}]
  %s2 = inlined_call_operand.hbm [shape: f32[2,4,256], index: 2, kind: output, shape index: {}]
  %s3 = sld [smem:[#allocation0]]
  $region45: #{tpu_custom_call.1} parent=0
    _
  %s5 = ssub.s32 1, %s3
  %s6 = scalar_select 0, %s5, %s3
  %7 = sst [smem:[#allocation2]] %s0
  $region1: #{tpu_custom_call.1} parent=0
    #allocation3 [shape = 'u8[8192]{0}', space=vmem, size = 0x2000, scoped, tag = 'input window, operand 1']
    #allocation4 [shape = 's32[2]{0}', space=sflag, size = 0x8, scoped, tag = 'scoped memory for tpu_custom_call.1']
    #allocation5 [shape = 's32[2]{0}', space=sflag, size = 0x8, scoped, tag = 'scoped memory for tpu_custom_call.1']
    #allocation6 [shape = 'u8[8192]{0}', space=vmem, size = 0x2000, scoped, tag = 'output window, operand 0']
    %8 = vsyncpa [#allocation4], 0
    %s9 = scalar_lea.sflag [#allocation4], 1
    %10 = vsyncpa %s9, 0
    %11 = vsyncpa [#allocation5], 0
    %s12 = scalar_lea.sflag [#allocation5], 1
    %13 = vsyncpa %s12, 0
    loop: start=0, step=1, limit=4
    $region2: #{tpu_custom_call.1} parent=1 // loop_pre_header
      _
    $region3: #{tpu_custom_call.1} parent=1 // loop_header
      %s15 = sphi 0, %s19
      %p16 = scmp.ge.s32.totalorder %s15, 4
      %s23 = sphi 0, %s23
      %s25 = sphi 0, %s23
      %s26 = sphi 0, %s25
      %s40 = sphi 0, %s26
      %s46 = sphi 0, %s48
      %s49 = sphi 0, %s46
      %s50 = sphi 0, %s49
      %s66 = sphi 0, %s50
      %s72 = sphi 0, %s74
      %s75 = sphi 0, %s72
      %s76 = sphi 0, %s75
      %s92 = sphi 0, %s76
    $region4: #{tpu_custom_call.1} parent=1 // loop_header_branch
      %18 = sbr.rel (%p16) target = $region8
    $region5: #{tpu_custom_call.1} parent=1 // loop_body
      %s20 = ssub.s32 %s15, 1
      %s21 = ssub.s32 %s15, 2
      %s22 = sadd.s32 %s15, 1
      %s24 = sadd.s32 %s23, 1
      %p27 = scmp.eq.s32.totalorder %s15, 1
      %p28 = scmp.ne.s32.totalorder %s23, %s25
      %p29 = scmp.eq.s32.totalorder %s15, 0
      %p30 = por %p28, %p29
      %p31 = scmp.ne.s32.totalorder %s23, %s25
      %p32 = scmp.eq.s32.totalorder %s20, 1
      %p33 = por %p31, %p32
      %p34 = scmp.ne.s32.totalorder %s25, %s26
      %p35 = scmp.eq.s32.totalorder %s20, 0
      %p36 = por %p34, %p35
      %p37 = scmp.ne.s32.totalorder %s25, %s26
      %p38 = scmp.eq.s32.totalorder %s21, 1
      %p39 = por %p37, %p38
      %p41 = scmp.ne.s32.totalorder %s26, %s40
      %p42 = scmp.eq.s32.totalorder %s21, 0
      %p43 = por %p41, %p42
      %s44 = ssub.s32 %s15, %s22
      %p45 = scmp.eq.s32.totalorder %s44, 0
      %s47 = sadd.s32 %s46, 1
      %s48 = scalar_select %p45, %s46, %s47
      %p51 = pneg %p45
      %p52 = scmp.eq.s32.totalorder %s15, 1
      %p53 = por %p51, %p52
      %p54 = scmp.ne.s32.totalorder %s46, %s49
      %p55 = scmp.eq.s32.totalorder %s15, 0
      %p56 = por %p54, %p55
      %p57 = scmp.ne.s32.totalorder %s46, %s49
      %p58 = scmp.eq.s32.totalorder %s20, 1
      %p59 = por %p57, %p58
      %p60 = scmp.ne.s32.totalorder %s49, %s50
      %p61 = scmp.eq.s32.totalorder %s20, 0
      %p62 = por %p60, %p61
      %p63 = scmp.ne.s32.totalorder %s49, %s50
      %p64 = scmp.eq.s32.totalorder %s21, 1
      %p65 = por %p63, %p64
      %p67 = scmp.ne.s32.totalorder %s50, %s66
      %p68 = scmp.eq.s32.totalorder %s21, 0
      %p69 = por %p67, %p68
      %s70 = ssub.s32 %s15, %s22
      %p71 = scmp.eq.s32.totalorder %s70, 0
      %s73 = sadd.s32 %s72, 1
      %s74 = scalar_select %p71, %s72, %s73
      %p77 = pneg %p71
      %p78 = scmp.eq.s32.totalorder %s15, 1
      %p79 = por %p77, %p78
      %p80 = scmp.ne.s32.totalorder %s72, %s75
      %p81 = scmp.eq.s32.totalorder %s15, 0
      %p82 = por %p80, %p81
      %p83 = scmp.ne.s32.totalorder %s72, %s75
      %p84 = scmp.eq.s32.totalorder %s20, 1
      %p85 = por %p83, %p84
      %p86 = scmp.ne.s32.totalorder %s75, %s76
      %p87 = scmp.eq.s32.totalorder %s20, 0
      %p88 = por %p86, %p87
      %p89 = scmp.ne.s32.totalorder %s75, %s76
      %p90 = scmp.eq.s32.totalorder %s21, 1
      %p91 = por %p89, %p90
      %p93 = scmp.ne.s32.totalorder %s76, %s92
      %p94 = scmp.eq.s32.totalorder %s21, 0
      %p95 = por %p93, %p94
      %p96 = scmp.le.s32.totalorder 1, %s15
      %p97 = scmp.lt.s32.totalorder %s15, 3
      %p98 = pnand %p96, %p97
      %p99 = pneg %p98
      // Predicated region
      $region9: #{tpu_custom_call.1} parent=5 // pred_check
        _
      $region10: #{tpu_custom_call.1} parent=5 // pred_check_branch
        %101 = sbr.rel (%p98) target = $region12
      $region11: #{tpu_custom_call.1} parent=5 // pred_region
        %s102 = ssub.s32 %s15, 1
        // Predicated region
        $region13: #{tpu_custom_call.1} parent=11 // pred_check
          %p103 = pneg %p36
        $region14: #{tpu_custom_call.1} parent=11 // pred_check_branch
          %105 = sbr.rel (%p103) target = $region16
        $region15: #{tpu_custom_call.1} parent=11 // pred_region
          _
        $region16: #{tpu_custom_call.1} parent=11 // pred_fallthru
          _
      $region12: #{tpu_custom_call.1} parent=5 // pred_fallthru
        _
      %p106 = scmp.lt.s32.totalorder %s15, 2
      // Predicated region
      $region17: #{tpu_custom_call.1} parent=5 // pred_check
        %p107 = pneg %p106
      $region18: #{tpu_custom_call.1} parent=5 // pred_check_branch
        %109 = sbr.rel (%p107) target = $region20
      $region19: #{tpu_custom_call.1} parent=5 // pred_region
        // Predicated region
        $region21: #{tpu_custom_call.1} parent=19 // pred_check
          %p110 = pneg %p56
        $region22: #{tpu_custom_call.1} parent=19 // pred_check_branch
          %112 = sbr.rel (%p110) target = $region24
        $region23: #{tpu_custom_call.1} parent=19 // pred_region
          %s113 = sand.u32 %s46, 1
          %s114 = scalar_lea.sflag [#allocation4], %s113
          %s115 = sand.u32 %s46, 1
          %s116 = smul.addr %s115, 8
          %s117 = scalar_lea.vmem [#allocation3], %s116
          %s119 = ssub.s32 128, 128
          %120 = vsyncadd %s114, %s119
          %s121 = smul.addr %s15, 2
          %s122 = smul.addr %s121, 64
          %s123 = scalar_lea.hbm %s1, %s122
          %s125 = sshll.u32 %s117, 4
          %s126 = int_to_ptr.vmem [resolvable:$true] %s125
          %128 = dma.hbm_to_vmem [thread:$0]  %s123, 128, %s126, %s114
        $region24: #{tpu_custom_call.1} parent=19 // pred_fallthru
          _
      $region20: #{tpu_custom_call.1} parent=5 // pred_fallthru
        _
      %p129 = scmp.le.s32.totalorder 1, %s15
      %p130 = scmp.lt.s32.totalorder %s15, 3
      %p131 = pnand %p129, %p130
      %p132 = pneg %p131
      // Predicated region
      $region25: #{tpu_custom_call.1} parent=5 // pred_check
        _
      $region26: #{tpu_custom_call.1} parent=5 // pred_check_branch
        %134 = sbr.rel (%p131) target = $region28
      $region27: #{tpu_custom_call.1} parent=5 // pred_region
        %s135 = ssub.s32 %s15, 1
        %s136 = sand.u32 %s49, 1
        %s137 = scalar_lea.sflag [#allocation4], %s136
        %s138 = sand.u32 %s49, 1
        %s139 = smul.addr %s138, 8
        %s140 = scalar_lea.vmem [#allocation3], %s139
        // Predicated region
        $region29: #{tpu_custom_call.1} parent=27 // pred_check
          %p141 = pneg %p62
        $region30: #{tpu_custom_call.1} parent=27 // pred_check_branch
          %143 = sbr.rel (%p141) target = $region32
        $region31: #{tpu_custom_call.1} parent=27 // pred_region
          %144 = dma.done %s137, 128
        $region32: #{tpu_custom_call.1} parent=27 // pred_fallthru
          _
        %p145 = pneg %p36
        %p146 = pneg %p33
        %s147 = sand.u32 %s49, 1
        %s148 = scalar_lea.sflag [#allocation4], %s147
        %s149 = sand.u32 %s49, 1
        %s150 = smul.addr %s149, 8
        %s151 = scalar_lea.vmem [#allocation3], %s150
        %p152 = pneg %p62
        %p153 = pneg %p59
        %p154 = pneg %p88
        %p155 = pneg %p85
        %s156 = sand.u32 %s75, 1
        %s157 = scalar_lea.sflag [#allocation5], %s156
        %s158 = sand.u32 %s75, 1
        %s159 = smul.addr %s158, 8
        %s160 = scalar_lea.vmem [#allocation6], %s159
        %v161 = vld [vmem:[%s140] sm:$0xff]
        %v163 = vcombine.high %v161, %v161
        %165 = vmatprep.subr.mxu0 %v163
        %166 = vmatpush1.xpose.msra.mxu0 %v161
        %167 = vmatprep.subr.mxu0 0.0
        %168 = vmatpush1.xpose.msra.mxu0 0.0
        %169 = vmatprep.subr.mxu0 0.0
        %170 = vmatpush1.xpose.msra.mxu0 0.0
        %171 = vmatprep.subr.mxu0 0.0
        %172 = vmatpush1.xpose.msra.mxu0 0.0
        %173 = vmatprep.subr.mxu0 0.0
        %174 = vmatpush1.xpose.msra.mxu0 0.0
        %175 = vmatprep.subr.mxu0 0.0
        %176 = vmatpush1.xpose.msra.mxu0 0.0
        %177 = vmatprep.subr.mxu0 0.0
        %178 = vmatpush1.xpose.msra.mxu0 0.0
        %179 = vmatprep.subr.mxu0 0.0
        %180 = vmatpush1.xpose.msra.mxu0 0.0
        %181 = vmatprep.subr.mxu0 0.0
        %182 = vmatpush1.xpose.msra.mxu0 0.0
        %183 = vmatprep.subr.mxu0 0.0
        %184 = vmatpush1.xpose.msra.mxu0 0.0
        %185 = vmatprep.subr.mxu0 0.0
        %186 = vmatpush1.xpose.msra.mxu0 0.0
        %187 = vmatprep.subr.mxu0 0.0
        %188 = vmatpush1.xpose.msra.mxu0 0.0
        %189 = vmatprep.subr.mxu0 0.0
        %190 = vmatpush1.xpose.msra.mxu0 0.0
        %191 = vmatprep.subr.mxu0 0.0
        %192 = vmatpush1.xpose.msra.mxu0 0.0
        %193 = vmatprep.subr.mxu0 0.0
        %194 = vmatpush1.xpose.msra.mxu0 0.0
        %195 = vmatprep.subr.mxu0 0.0
        %196 = vmatpush1.xpose.msra.mxu0 0.0
        %197 = vmatprep.subr.mxu0 0.0
        %198 = vmatpush1.xpose.msra.mxu0 0.0
        %199 = vmatprep.subr.mxu0 0.0
        %200 = vmatpush1.xpose.msra.mxu0 0.0
        %201 = vmatprep.subr.mxu0 0.0
        %202 = vmatpush1.xpose.msra.mxu0 0.0
        %203 = vmatprep.subr.mxu0 0.0
        %204 = vmatpush1.xpose.msra.mxu0 0.0
        %205 = vmatprep.subr.mxu0 0.0
        %206 = vmatpush1.xpose.msra.mxu0 0.0
        %207 = vmatprep.subr.mxu0 0.0
        %208 = vmatpush1.xpose.msra.mxu0 0.0
        %209 = vmatprep.subr.mxu0 0.0
        %210 = vmatpush1.xpose.msra.mxu0 0.0
        %211 = vmatprep.subr.mxu0 0.0
        %212 = vmatpush1.xpose.msra.mxu0 0.0
        %213 = vmatprep.subr.mxu0 0.0
        %214 = vmatpush1.xpose.msra.mxu0 0.0
        %215 = vmatprep.subr.mxu0 0.0
        %216 = vmatpush1.xpose.msra.mxu0 0.0
        %217 = vmatprep.subr.mxu0 0.0
        %218 = vmatpush1.xpose.msra.mxu0 0.0
        %219 = vmatprep.subr.mxu0 0.0
        %220 = vmatpush1.xpose.msra.mxu0 0.0
        %221 = vmatprep.subr.mxu0 0.0
        %222 = vmatpush1.xpose.msra.mxu0 0.0
        %223 = vmatprep.subr.mxu0 0.0
        %224 = vmatpush1.xpose.msra.mxu0 0.0
        %225 = vmatprep.subr.mxu0 0.0
        %226 = vmatpush1.xpose.msra.mxu0 0.0
        %227 = vmatprep.subr.mxu0 0.0
        %228 = vmatpush1.xpose.msra.mxu0 0.0
        %229 = vmatprep.mubr.f32.mxu0 %v163
        %230 = vmatmul.mubr.f32.gmra.mrb[0].mxu0 %v161
        %v231 = vpop.f32.mrb[0].mxu0
        %v232 = vadd.f32 0.0, %v231
        %v233 = vpop.f32.mrb[0].mxu0
        %234 = vdwg.mxu0
        %vm235 = vcmask 27648
        %v236 = vsel %vm235, %v232, -inf
        %v237 = vrot.slane %v236, 4
        %v238 = vmax.f32 %v236, %v237
        %v239 = vrot.slane %v238, 2
        %v240 = vmax.f32 %v238, %v239
        %v241 = vrot.slane %v240, 1
        %v242 = vmax.f32 %v240, %v241
        %v243 = vsub.f32 %v232, %v242
        %v244 = vmul.f32 %v243, 1.442695
        %v245 = vpow.pop %v244
        %v246 = vsel %vm235, %v245, 0.0
        %v247 = vrot.slane %v246, 4
        %v248 = vadd.f32 %v246, %v247
        %v249 = vrot.slane %v248, 2
        %v250 = vadd.f32 %v248, %v249
        %v251 = vrot.slane %v250, 1
        %v252 = vadd.f32 %v250, %v251
        %v253 = vrcp.pop %v252
        %v254 = vmul.f32 %v245, %v253
        %vm255 = vcmask 31744
        %v257 = vsel %vm255, %v254, 0
        %vm259 = vcmask 1043456
        %v260 = vsel %vm259, %v161, 0
        %v262 = vsel %vm259, %v163, 0
        %264 = vmatprep.subr.mxu0 %v262
        %265 = vmatpush1.msra.mxu0 %v260
        %266 = vmatprep.subr.mxu0 0.0
        %267 = vmatpush1.msra.mxu0 0.0
        %268 = vmatprep.subr.mxu0 0.0
        %269 = vmatpush1.msra.mxu0 0.0
        %270 = vmatprep.subr.mxu0 0.0
        %271 = vmatpush1.msra.mxu0 0.0
        %272 = vmatprep.subr.mxu0 0.0
        %273 = vmatpush1.msra.mxu0 0.0
        %274 = vmatprep.subr.mxu0 0.0
        %275 = vmatpush1.msra.mxu0 0.0
        %276 = vmatprep.subr.mxu0 0.0
        %277 = vmatpush1.msra.mxu0 0.0
        %278 = vmatprep.subr.mxu0 0.0
        %279 = vmatpush1.msra.mxu0 0.0
        %280 = vmatprep.subr.mxu0 0.0
        %281 = vmatpush1.msra.mxu0 0.0
        %282 = vmatprep.subr.mxu0 0.0
        %283 = vmatpush1.msra.mxu0 0.0
        %284 = vmatprep.subr.mxu0 0.0
        %285 = vmatpush1.msra.mxu0 0.0
        %286 = vmatprep.subr.mxu0 0.0
        %287 = vmatpush1.msra.mxu0 0.0
        %288 = vmatprep.subr.mxu0 0.0
        %289 = vmatpush1.msra.mxu0 0.0
        %290 = vmatprep.subr.mxu0 0.0
        %291 = vmatpush1.msra.mxu0 0.0
        %292 = vmatprep.subr.mxu0 0.0
        %293 = vmatpush1.msra.mxu0 0.0
        %294 = vmatprep.subr.mxu0 0.0
        %295 = vmatpush1.msra.mxu0 0.0
        %296 = vmatprep.subr.mxu0 0.0
        %297 = vmatpush1.msra.mxu0 0.0
        %298 = vmatprep.subr.mxu0 0.0
        %299 = vmatpush1.msra.mxu0 0.0
        %300 = vmatprep.subr.mxu0 0.0
        %301 = vmatpush1.msra.mxu0 0.0
        %302 = vmatprep.subr.mxu0 0.0
        %303 = vmatpush1.msra.mxu0 0.0
        %304 = vmatprep.subr.mxu0 0.0
        %305 = vmatpush1.msra.mxu0 0.0
        %306 = vmatprep.subr.mxu0 0.0
        %307 = vmatpush1.msra.mxu0 0.0
        %308 = vmatprep.subr.mxu0 0.0
        %309 = vmatpush1.msra.mxu0 0.0
        %310 = vmatprep.subr.mxu0 0.0
        %311 = vmatpush1.msra.mxu0 0.0
        %312 = vmatprep.subr.mxu0 0.0
        %313 = vmatpush1.msra.mxu0 0.0
        %314 = vmatprep.subr.mxu0 0.0
        %315 = vmatpush1.msra.mxu0 0.0
        %316 = vmatprep.subr.mxu0 0.0
        %317 = vmatpush1.msra.mxu0 0.0
        %318 = vmatprep.subr.mxu0 0.0
        %319 = vmatpush1.msra.mxu0 0.0
        %320 = vmatprep.subr.mxu0 0.0
        %321 = vmatpush1.msra.mxu0 0.0
        %322 = vmatprep.subr.mxu0 0.0
        %323 = vmatpush1.msra.mxu0 0.0
        %324 = vmatprep.subr.mxu0 0.0
        %325 = vmatpush1.msra.mxu0 0.0
        %326 = vmatprep.subr.mxu0 0.0
        %327 = vmatpush1.msra.mxu0 0.0
        %328 = vmatprep.mubr.f32.mxu0 0.0
        %329 = vmatmul.mubr.f32.gmra.mrb[0].mxu0 %v257
        %v330 = vpop.f32.mrb[0].mxu0
        %v331 = vadd.f32 0.0, %v330
        %v332 = vpop.f32.mrb[0].mxu0
        %v333 = vadd.f32 0.0, %v332
        %334 = vdwg.mxu0
        %s335 = sld [smem:[#allocation2]]
        %v336 = vstv %s335
        %v337 = vmul.f32 %v336, %v331
        %v338 = vmul.f32 %v336, %v333
        %v339 = vadd.f32 %v337, %v161
        %v340 = vadd.f32 %v338, %v163
        %v343 = vcombine.low %v339, %v340
        %345 = vst [vmem:[%s160] sm:$0xff] %v343
        %s346 = sand.u32 %s75, 1
        %s347 = scalar_lea.sflag [#allocation5], %s346
        %s348 = sand.u32 %s75, 1
        %s349 = smul.addr %s348, 8
        %s350 = scalar_lea.vmem [#allocation6], %s349
        // Predicated region
        $region33: #{tpu_custom_call.1} parent=27 // pred_check
          %p351 = pneg %p85
        $region34: #{tpu_custom_call.1} parent=27 // pred_check_branch
          %353 = sbr.rel (%p351) target = $region36
        $region35: #{tpu_custom_call.1} parent=27 // pred_region
          %s355 = ssub.s32 128, 128
          %356 = vsyncadd %s347, %s355
          %s357 = smul.addr %s20, 2
          %s358 = smul.addr %s357, 64
          %s359 = scalar_lea.hbm %s2, %s358
          %s361 = sshll.u32 %s350, 4
          %s362 = int_to_ptr.vmem [resolvable:$true] %s361
          %364 = dma.vmem_to_hbm [thread:$0]  %s362, 128, %s359, %s347
        $region36: #{tpu_custom_call.1} parent=27 // pred_fallthru
          _
      $region28: #{tpu_custom_call.1} parent=5 // pred_fallthru
        _
      %p365 = scmp.le.s32.totalorder 2, %s15
      // Predicated region
      $region37: #{tpu_custom_call.1} parent=5 // pred_check
        %p366 = pneg %p365
      $region38: #{tpu_custom_call.1} parent=5 // pred_check_branch
        %368 = sbr.rel (%p366) target = $region40
      $region39: #{tpu_custom_call.1} parent=5 // pred_region
        %s369 = ssub.s32 %s15, 2
        // Predicated region
        $region41: #{tpu_custom_call.1} parent=39 // pred_check
          %p370 = pneg %p91
        $region42: #{tpu_custom_call.1} parent=39 // pred_check_branch
          %372 = sbr.rel (%p370) target = $region44
        $region43: #{tpu_custom_call.1} parent=39 // pred_region
          %s373 = sand.u32 %s76, 1
          %s374 = scalar_lea.sflag [#allocation5], %s373
          %s375 = sand.u32 %s76, 1
          %s376 = smul.addr %s375, 8
          %s377 = scalar_lea.vmem [#allocation6], %s376
          %378 = dma.done %s374, 128
        $region44: #{tpu_custom_call.1} parent=39 // pred_fallthru
          _
      $region40: #{tpu_custom_call.1} parent=5 // pred_fallthru
        _
    $region6: #{tpu_custom_call.1} parent=1 // loop_footer
      %s19 = sadd.s32 1, %s15
    $region7: #{tpu_custom_call.1} parent=1 // loop_footer_branch
      %14 = sbr.rel target = $region3
    $region8: #{tpu_custom_call.1} parent=1 // loop_exit
      _
    %379 = vsyncpa [#allocation4], 1
    %s380 = scalar_lea.sflag [#allocation4], 1
    %381 = vsyncpa %s380, 1
    %382 = vsyncpa [#allocation5], 1
    %s383 = scalar_lea.sflag [#allocation5], 1
    %384 = vsyncpa %s383, 1

</llo_original>
